<compile_context>
chip_gen: v7x
topology: tpu7x:2x2x1
jax: 0.10.0
libtpu: 0.0.40
codegen_flags: <defaults>
</compile_context>

<pallas_src>
import jax
import jax.numpy as jnp
from jax import lax
from jax.experimental import pallas as pl
from jax.experimental.pallas import tpu as pltpu


def _round_up(x, m):
    return ((x + m - 1) // m) * m


def _cdiv(a, b):
    return (a + b - 1) // b


def _choose_tile(n, tm_max):
    """Pick a batch-tile size (lane dim of the transposed outputs).

    Single full-size block if the batch fits; otherwise a multiple of 128 sized so
    the grid has an even number of steps (balances v7x's 2 TensorCores under
    dimension_semantics=("parallel",)).
    """
    if n <= tm_max:
        return n, 1
    steps = _cdiv(n, tm_max)
    if steps % 2:
        steps += 1
    tm = _round_up(_cdiv(n, steps), 128)
    tm = max(128, min(tm, tm_max))
    return tm, _cdiv(n, tm)


def _categorical_pd_kernel(feats_ref, w_ref, b_ref, logits_ref, mode_ref):
    # z: (C, TM) = W(C,F) @ feats(TM,F)^T  -> lane (fast) axis is the batch tile.
    # (Review item: verified-form dot_general(w, feats) contracting F on both; the
    #  weight LHS is already in natural MXU orientation.)
    z = lax.dot_general(
        w_ref[...], feats_ref[...],
        dimension_numbers=(((1,), (1,)), ((), ())),
        preferred_element_type=jnp.float32,
    ) + b_ref[...]                                   # (C, TM) + (C, 1)

    # Per-column max over the tiny category axis (shared by argmax and logsumexp).
    m = jnp.max(z, axis=0, keepdims=True)            # (1, TM)

    # Categorical.mode == argmax over categories; first-index tie-break (same as
    # torch.argmax).  iota+min lowers to plain VPU/XLU ops on lane-dense tiles.
    idx = lax.broadcasted_iota(jnp.int32, z.shape, 0)
    sentinel = jnp.iinfo(jnp.int32).max
    mode_ref[...] = jnp.min(jnp.where(z == m, idx, sentinel),
                            axis=0, keepdims=True).astype(mode_ref.dtype)

    # torch.distributions.Categorical normalization (f32, max-subtracted).
    lse = m + jnp.log(jnp.sum(jnp.exp(z - m), axis=0, keepdims=True))   # (1, TM)
    logits_ref[...] = (z - lse).astype(logits_ref.dtype)


def categorical_pd_forward(feats, weight, bias, *, tm=2048):
    """CategoricalPDType forward.

    Args:
      feats:  (N, in_features) float32
      weight: (n_cat, in_features) float32  -- nn.Linear weight layout (NOT transposed)
      bias:   (n_cat,) float32
      tm:     max batch-tile size (lane dim of the transposed kernel outputs)
    Returns:
      dict mimicking the Categorical distribution:
        logits: (N, n_cat)  normalized logits (what torch Categorical stores /
                            what .flat_params returns)
        mode:   (N,)        argmax over categories (Categorical.mode)
    """
    n, f = feats.shape
    n_cat = weight.shape[0]
    b2 = bias.reshape(n_cat, 1)          # broadcasts over the lane (batch) axis

    tm_eff, n_steps = _choose_tile(n, tm)
    grid = (n_steps,)

    cost = pl.CostEstimate(
        flops=2 * n * f * n_cat + 6 * n * n_cat,
        transcendentals=n * (n_cat + 1),
        bytes_accessed=(n * f * 4 + n_cat * f * 4 + n_cat * 4
                        + n * n_cat * 4 + n * 4),
    )

    logits_t, mode = pl.pallas_call(
        _categorical_pd_kernel,
        out_shape=(
            jax.ShapeDtypeStruct((n_cat, n), jnp.float32),   # lane-dense: last dim = N
            jax.ShapeDtypeStruct((1, n), jnp.int32),
        ),
        grid_spec=pltpu.PrefetchScalarGridSpec(
            num_scalar_prefetch=0,
            grid=grid,
            in_specs=[
                pl.BlockSpec((tm_eff, f), lambda i: (i, 0)),     # feats: tiled rows
                pl.BlockSpec((n_cat, f), lambda i: (0, 0)),      # weight: resident
                pl.BlockSpec((n_cat, 1), lambda i: (0, 0)),      # bias: resident
            ],
            out_specs=(
                pl.BlockSpec((n_cat, tm_eff), lambda i: (0, i)),
                pl.BlockSpec((1, tm_eff), lambda i: (0, i)),
            ),
        ),
        compiler_params=pltpu.CompilerParams(
            dimension_semantics=("parallel",),   # batch tiles split across TCs (v7x)
        ),
        cost_estimate=cost,
    )(feats, weight, b2)

    # Small layout fixups on tiny (n_cat x N / 1 x N) slabs; the bulk HBM traffic
    # (feats, logits) is touched exactly once, inside the kernel.
    return {"logits": logits_t.T, "mode": mode[0]}


def init_params(key, n_cat, in_features):
    """Deterministic init matching the module: orthogonal(gain=0.01) weight, zero bias."""
    w = jax.nn.initializers.orthogonal(scale=0.01)(
        key, (n_cat, in_features), jnp.float32)
    b = jnp.zeros((n_cat,), jnp.float32)
    return w, b


if __name__ == "__main__":
    key = jax.random.PRNGKey(0)
    k_feat, k_w = jax.random.split(key)

    N, IN_FEATURES, N_CAT = 8, 32, 10
    feats = jax.random.normal(k_feat, (N, IN_FEATURES), jnp.float32)
    weight, bias = init_params(k_w, N_CAT, IN_FEATURES)

    out = categorical_pd_forward(feats, weight, bias)
    jax.block_until_ready(out)

    # Sanity check against plain-JAX reference.
    ref_raw = feats @ weight.T + bias
    ref_norm = ref_raw - jax.scipy.special.logsumexp(ref_raw, axis=-1, keepdims=True)
    assert out["logits"].shape == (N, N_CAT)
    assert jnp.allclose(out["logits"], ref_norm, atol=1e-5)
    assert jnp.array_equal(out["mode"], jnp.argmax(ref_raw, axis=1))

    # Also exercise a larger, non-multiple-of-tile batch to cover the ragged-grid path.
    N2 = 2500
    feats2 = jax.random.normal(jax.random.PRNGKey(1), (N2, IN_FEATURES), jnp.float32)
    out2 = categorical_pd_forward(feats2, weight, bias, tm=2048)
    jax.block_until_ready(out2)
    ref_raw2 = feats2 @ weight.T + bias
    ref_norm2 = ref_raw2 - jax.scipy.special.logsumexp(ref_raw2, axis=-1, keepdims=True)
    assert jnp.allclose(out2["logits"], ref_norm2, atol=1e-5)
    assert jnp.array_equal(out2["mode"], jnp.argmax(ref_raw2, axis=1))

    print("KERNEL_OK")
</pallas_src>

<mosaic_0001>
module attributes {stable_mosaic.version = 11 : i64} {
  func.func @_categorical_pd_kernel(%arg0: i32, %arg1: memref<8x32xf32, #tpu.memory_space<vmem>>, %arg2: memref<10x32xf32, #tpu.memory_space<vmem>>, %arg3: memref<10x1xf32, #tpu.memory_space<vmem>>, %arg4: memref<10x8xf32, #tpu.memory_space<vmem>>, %arg5: memref<1x8xi32, #tpu.memory_space<vmem>>) attributes {dimension_semantics = [#tpu.dimension_semantics<parallel>], iteration_bounds = array<i64: 1>, scalar_prefetch = 0 : i64, scratch_operands = 0 : i64, tpu.core_type = #tpu.core_type<tc>, window_params = [{transform_indices = @transform_0, window_bounds = array<i64: 8, 32>}, {pipeline_mode = #tpu.pipeline_mode<synchronous>, transform_indices = @transform_1, window_bounds = array<i64: 10, 32>}, {pipeline_mode = #tpu.pipeline_mode<synchronous>, transform_indices = @transform_2, window_bounds = array<i64: 10, 1>}, {transform_indices = @transform_3, window_bounds = array<i64: 10, 8>}, {transform_indices = @transform_4, window_bounds = array<i64: 1, 8>}]} {
    %c0 = arith.constant 0 : index
    %c0_0 = arith.constant 0 : index
    %0 = vector.load %arg2[%c0, %c0_0] : memref<10x32xf32, #tpu.memory_space<vmem>>, vector<10x32xf32>
    %c0_1 = arith.constant 0 : index
    %c0_2 = arith.constant 0 : index
    %1 = vector.load %arg1[%c0_1, %c0_2] : memref<8x32xf32, #tpu.memory_space<vmem>>, vector<8x32xf32>
    %cst = arith.constant dense<0.000000e+00> : vector<10x8xf32>
    %2 = tpu.matmul %0, %1, %cst {dimension_numbers = #tpu.dot_dimension_numbers<[1], [1], [0], [0], [0, 0, 1, 0], [], []>} : vector<10x32xf32>, vector<8x32xf32>, vector<10x8xf32> -> vector<10x8xf32>
    %c0_3 = arith.constant 0 : index
    %c0_4 = arith.constant 0 : index
    %3 = vector.load %arg3[%c0_3, %c0_4] : memref<10x1xf32, #tpu.memory_space<vmem>>, vector<10x1xf32>
    %4 = vector.broadcast %3 : vector<10x1xf32> to vector<10x8xf32>
    %5 = arith.addf %2, %4 : vector<10x8xf32>
    %cst_5 = arith.constant dense<0xFF800000> : vector<8xf32>
    %6 = vector.multi_reduction <maximumf>, %5, %cst_5 [0] : vector<10x8xf32> to vector<8xf32>
    %7 = vector.shape_cast %6 : vector<8xf32> to vector<1x8xf32>
    %8 = tpu.iota {dimensions = array<i32: 0>} : vector<10x8xi32>
    %9 = vector.broadcast %7 : vector<1x8xf32> to vector<10x8xf32>
    %10 = arith.cmpf oeq, %5, %9 : vector<10x8xf32>
    %c2147483647_i32 = arith.constant 2147483647 : i32
    %11 = vector.broadcast %c2147483647_i32 : i32 to vector<10x8xi32>
    %12 = arith.select %10, %8, %11 : vector<10x8xi1>, vector<10x8xi32>
    %cst_6 = arith.constant dense<2147483647> : vector<8xi32>
    %13 = vector.multi_reduction <minsi>, %12, %cst_6 [0] : vector<10x8xi32> to vector<8xi32>
    %14 = vector.shape_cast %13 : vector<8xi32> to vector<1x8xi32>
    %c0_7 = arith.constant 0 : index
    %c0_8 = arith.constant 0 : index
    %15 = vector.load %arg5[%c0_7, %c0_8] : memref<1x8xi32, #tpu.memory_space<vmem>>, vector<1x8xi32>
    tpu.vector_store %arg5[%c0_7, %c0_8], %14 {strides = array<i32>} : memref<1x8xi32, #tpu.memory_space<vmem>>, vector<1x8xi32>,
    %16 = vector.broadcast %7 : vector<1x8xf32> to vector<10x8xf32>
    %17 = arith.subf %5, %16 : vector<10x8xf32>
    %18 = math.exp %17 : vector<10x8xf32>
    %cst_9 = arith.constant dense<0.000000e+00> : vector<8xf32>
    %19 = vector.multi_reduction <add>, %18, %cst_9 [0] : vector<10x8xf32> to vector<8xf32>
    %20 = vector.shape_cast %19 : vector<8xf32> to vector<1x8xf32>
    %21 = math.log %20 : vector<1x8xf32>
    %22 = arith.addf %7, %21 : vector<1x8xf32>
    %23 = vector.broadcast %22 : vector<1x8xf32> to vector<10x8xf32>
    %24 = arith.subf %5, %23 : vector<10x8xf32>
    %c0_10 = arith.constant 0 : index
    %c0_11 = arith.constant 0 : index
    %25 = vector.load %arg4[%c0_10, %c0_11] : memref<10x8xf32, #tpu.memory_space<vmem>>, vector<10x8xf32>
    tpu.vector_store %arg4[%c0_10, %c0_11], %24 {strides = array<i32>} : memref<10x8xf32, #tpu.memory_space<vmem>>, vector<10x8xf32>,
    return
  }
  func.func @transform_0(%arg0: i32) -> (i32, i32) {
    %c0_i32 = arith.constant 0 : i32
    %c0_i32_0 = arith.constant 0 : i32
    return %arg0, %c0_i32 : i32, i32
  }
  func.func @transform_1(%arg0: i32) -> (i32, i32) {
    %c0_i32 = arith.constant 0 : i32
    %c0_i32_0 = arith.constant 0 : i32
    %c0_i32_1 = arith.constant 0 : i32
    return %c0_i32, %c0_i32_0 : i32, i32
  }
  func.func @transform_2(%arg0: i32) -> (i32, i32) {
    %c0_i32 = arith.constant 0 : i32
    %c0_i32_0 = arith.constant 0 : i32
    %c0_i32_1 = arith.constant 0 : i32
    return %c0_i32, %c0_i32_0 : i32, i32
  }
  func.func @transform_3(%arg0: i32) -> (i32, i32) {
    %c0_i32 = arith.constant 0 : i32
    %c0_i32_0 = arith.constant 0 : i32
    return %c0_i32, %arg0 : i32, i32
  }
  func.func @transform_4(%arg0: i32) -> (i32, i32) {
    %c0_i32 = arith.constant 0 : i32
    %c0_i32_0 = arith.constant 0 : i32
    return %c0_i32, %arg0 : i32, i32
  }
}

</mosaic_0001>

<llo_original>
// kernel: tpu_custom_call.1
$region0: #{tpu_custom_call.1}
  #allocation0 [shape = 'u32[]', space=smem, size = 0x4, offset = 0x4, fixed_abs, tag = 'smem constant byte address 0x4 - core index']
  #allocation1 [shape = 'u32[144,128]{1,0:T(1,128)}', space=vmem, size = 0x12000, scoped, tag = 'internal scratch']
  %s0 = inlined_call_operand.hbm [shape: f32[8,32], index: 0, kind: input, shape index: {}]
  %s1 = inlined_call_operand.vmem [shape: f32[10,32], index: 1, kind: input, shape index: {}]
  %s2 = inlined_call_operand.vmem [shape: f32[10,1], index: 2, kind: input, shape index: {}]
  %s3 = inlined_call_operand.vmem [shape: f32[10,8], index: 3, kind: output, shape index: {0}]
  %s4 = inlined_call_operand.hbm [shape: s32[1,8], index: 4, kind: output, shape index: {1}]
  %5 = xla_tuple %s3, %s4
  %s6 = sld [smem:[#allocation0]]
  $region34: #{tpu_custom_call.1} parent=0
    _
  %s8 = ssub.s32 1, %s6
  %s9 = scalar_select 0, %s8, %s6
  $region1: #{tpu_custom_call.1} parent=0
    #allocation2 [shape = 'u8[4096]{0}', space=vmem, size = 0x1000, scoped, tag = 'input window, operand 0, single buffered']
    #allocation3 [shape = 's32[1]{0}', space=sflag, size = 0x4, scoped, tag = 'scoped memory for tpu_custom_call.1']
    #allocation4 [shape = 's32[1]{0}', space=sflag, size = 0x4, scoped, tag = 'scoped memory for tpu_custom_call.1']
    #allocation5 [shape = 'u8[512]{0}', space=vmem, size = 0x400, scoped, tag = 'output window, operand 1, single buffered']
    %10 = vsyncpa [#allocation3], 0
    %11 = vsyncpa [#allocation4], 0
    // Predicated region
    $region2: #{tpu_custom_call.1} parent=1 // pred_check
      _
    $region3: #{tpu_custom_call.1} parent=1 // pred_check_branch
      %13 = sbr.rel (0) target = $region5
    $region4: #{tpu_custom_call.1} parent=1 // pred_region
      %s15 = ssub.s32 128, 128
      %16 = vsyncadd [#allocation3], %s15
      %s18 = sshll.u32 [#allocation2], 4
      %s19 = int_to_ptr.vmem [resolvable:$true] %s18
      %21 = dma.hbm_to_vmem [thread:$0]  %s0, 128, %s19, [#allocation3]
    $region5: #{tpu_custom_call.1} parent=1 // pred_fallthru
      _
    // Predicated region
    $region6: #{tpu_custom_call.1} parent=1 // pred_check
      _
    $region7: #{tpu_custom_call.1} parent=1 // pred_check_branch
      %23 = sbr.rel (0) target = $region9
    $region8: #{tpu_custom_call.1} parent=1 // pred_region
      _
    $region9: #{tpu_custom_call.1} parent=1 // pred_fallthru
      _
    // Predicated region
    $region10: #{tpu_custom_call.1} parent=1 // pred_check
      _
    $region11: #{tpu_custom_call.1} parent=1 // pred_check_branch
      %25 = sbr.rel (0) target = $region13
    $region12: #{tpu_custom_call.1} parent=1 // pred_region
      _
    $region13: #{tpu_custom_call.1} parent=1 // pred_fallthru
      _
    // Predicated region
    $region14: #{tpu_custom_call.1} parent=1 // pred_check
      _
    $region15: #{tpu_custom_call.1} parent=1 // pred_check_branch
      %27 = sbr.rel (0) target = $region17
    $region16: #{tpu_custom_call.1} parent=1 // pred_region
      %28 = dma.done [#allocation3], 128
    $region17: #{tpu_custom_call.1} parent=1 // pred_fallthru
      _
    %v29 = vld [vmem:[%s1] sm:$0xff]
    %v30 = vld [vmem:[%s1 + $0x8] sm:$0x3]
    %v31 = vld [vmem:[#allocation2] sm:$0xff]
    %v32 = vld [vmem:[%s2] sm:$0xff]
    %v33 = vld [vmem:[%s2 + $0x8] sm:$0x3]
    %35 = vset.pattern.permute.xlu0 0
    %36 = vperm.xlu0 %35, %v32
    %v37 = vpop.permute.xlu0 %36
    %40 = vset.pattern.permute.xlu0 0
    %41 = vperm.xlu0 %40, %v33
    %v42 = vpop.permute.xlu0 %41
    %vm44 = vcmask 261120
    %v46 = vsel %vm44, %v29, 0
    %v49 = vsel %vm44, %v30, 0
    %v52 = vsel %vm44, %v31, 0
    %54 = vmatprep.subr.mxu0 0.0
    %55 = vmatpush1.xpose.msra.mxu0 %v52
    %56 = vmatprep.subr.mxu0 0.0
    %57 = vmatpush1.xpose.msra.mxu0 0.0
    %58 = vmatprep.subr.mxu0 0.0
    %59 = vmatpush1.xpose.msra.mxu0 0.0
    %60 = vmatprep.subr.mxu0 0.0
    %61 = vmatpush1.xpose.msra.mxu0 0.0
    %62 = vmatprep.subr.mxu0 0.0
    %63 = vmatpush1.xpose.msra.mxu0 0.0
    %64 = vmatprep.subr.mxu0 0.0
    %65 = vmatpush1.xpose.msra.mxu0 0.0
    %66 = vmatprep.subr.mxu0 0.0
    %67 = vmatpush1.xpose.msra.mxu0 0.0
    %68 = vmatprep.subr.mxu0 0.0
    %69 = vmatpush1.xpose.msra.mxu0 0.0
    %70 = vmatprep.subr.mxu0 0.0
    %71 = vmatpush1.xpose.msra.mxu0 0.0
    %72 = vmatprep.subr.mxu0 0.0
    %73 = vmatpush1.xpose.msra.mxu0 0.0
    %74 = vmatprep.subr.mxu0 0.0
    %75 = vmatpush1.xpose.msra.mxu0 0.0
    %76 = vmatprep.subr.mxu0 0.0
    %77 = vmatpush1.xpose.msra.mxu0 0.0
    %78 = vmatprep.subr.mxu0 0.0
    %79 = vmatpush1.xpose.msra.mxu0 0.0
    %80 = vmatprep.subr.mxu0 0.0
    %81 = vmatpush1.xpose.msra.mxu0 0.0
    %82 = vmatprep.subr.mxu0 0.0
    %83 = vmatpush1.xpose.msra.mxu0 0.0
    %84 = vmatprep.subr.mxu0 0.0
    %85 = vmatpush1.xpose.msra.mxu0 0.0
    %86 = vmatprep.subr.mxu0 0.0
    %87 = vmatpush1.xpose.msra.mxu0 0.0
    %88 = vmatprep.subr.mxu0 0.0
    %89 = vmatpush1.xpose.msra.mxu0 0.0
    %90 = vmatprep.subr.mxu0 0.0
    %91 = vmatpush1.xpose.msra.mxu0 0.0
    %92 = vmatprep.subr.mxu0 0.0
    %93 = vmatpush1.xpose.msra.mxu0 0.0
    %94 = vmatprep.subr.mxu0 0.0
    %95 = vmatpush1.xpose.msra.mxu0 0.0
    %96 = vmatprep.subr.mxu0 0.0
    %97 = vmatpush1.xpose.msra.mxu0 0.0
    %98 = vmatprep.subr.mxu0 0.0
    %99 = vmatpush1.xpose.msra.mxu0 0.0
    %100 = vmatprep.subr.mxu0 0.0
    %101 = vmatpush1.xpose.msra.mxu0 0.0
    %102 = vmatprep.subr.mxu0 0.0
    %103 = vmatpush1.xpose.msra.mxu0 0.0
    %104 = vmatprep.subr.mxu0 0.0
    %105 = vmatpush1.xpose.msra.mxu0 0.0
    %106 = vmatprep.subr.mxu0 0.0
    %107 = vmatpush1.xpose.msra.mxu0 0.0
    %108 = vmatprep.subr.mxu0 0.0
    %109 = vmatpush1.xpose.msra.mxu0 0.0
    %110 = vmatprep.subr.mxu0 0.0
    %111 = vmatpush1.xpose.msra.mxu0 0.0
    %112 = vmatprep.subr.mxu0 0.0
    %113 = vmatpush1.xpose.msra.mxu0 0.0
    %114 = vmatprep.subr.mxu0 0.0
    %115 = vmatpush1.xpose.msra.mxu0 0.0
    %116 = vmatprep.subr.mxu0 0.0
    %117 = vmatpush1.xpose.msra.mxu0 0.0
    %118 = vmatprep.mubr.f32.mxu0 0.0
    %119 = vmatmul.mubr.f32.gmra.mrb[0].mxu0 %v46
    %v120 = vpop.f32.mrb[0].mxu0
    %v121 = vadd.f32 %v37, %v120
    %v122 = vpop.f32.mrb[0].mxu0
    %123 = vmatprep.mubr.f32.mxu0 0.0
    %124 = vmatmul.mubr.f32.gmra.mrb[0].mxu0 %v49
    %v125 = vpop.f32.mrb[0].mxu0
    %v126 = vadd.f32 %v42, %v125
    %v127 = vpop.f32.mrb[0].mxu0
    %128 = vdwg.mxu0
    %vm129 = vcmask 64512
    %v130 = vsel %vm129, %v121, -inf
    %vm131 = vcmask 58368
    %v132 = vsel %vm131, %v126, -inf
    %v133 = vmax.f32 %v130, %v132
    %v134 = vrot.slane %v133, 4
    %v135 = vmax.f32 %v133, %v134
    %v136 = vrot.slane %v135, 2
    %v137 = vmax.f32 %v135, %v136
    %v138 = vrot.slane %v137, 1
    %v139 = vmax.f32 %v137, %v138
    %v140 = vlaneseq
    %v141 = vshrl.u32 %v140, 7
    %v142 = vadd.s32 %v141, 8
    %vm143 = vcmp.eq.f32.partialorder %v121, %v139
    %vm144 = vcmp.eq.f32.partialorder %v126, %v139
    %v145 = vsel %vm143, %v141, 2147483647
    %v146 = vsel %vm144, %v142, 2147483647
    %v147 = vsel %vm129, %v145, 2147483647
    %v148 = vsel %vm131, %v146, 2147483647
    %vm149 = vcmp.lt.s32.totalorder %v147, %v148
    %v150 = vsel %vm149, %v147, %v148
    %v151 = vrot.slane %v150, 4
    %vm152 = vcmp.lt.s32.totalorder %v150, %v151
    %v153 = vsel %vm152, %v150, %v151
    %v154 = vrot.slane %v153, 2
    %vm155 = vcmp.lt.s32.totalorder %v153, %v154
    %v156 = vsel %vm155, %v153, %v154
    %v157 = vrot.slane %v156, 1
    %vm158 = vcmp.lt.s32.totalorder %v156, %v157
    %v159 = vsel %vm158, %v156, %v157
    %vm160 = vcmask 57344
    %161 = vst.msk [vmem:[#allocation5] sm:$0x1] %vm160, %v159
    %v162 = vsub.f32 %v121, %v139
    %v163 = vsub.f32 %v126, %v139
    %v164 = vmul.f32 %v162, 1.442695
    %v165 = vpow.pop %v164
    %v166 = vmul.f32 %v163, 1.442695
    %v167 = vpow.pop %v166
    %v168 = vsel %vm129, %v165, 0.0
    %v169 = vsel %vm131, %v167, 0.0
    %v170 = vadd.f32 %v168, %v169
    %v171 = vrot.slane %v170, 4
    %v172 = vadd.f32 %v170, %v171
    %v173 = vrot.slane %v172, 2
    %v174 = vadd.f32 %v172, %v173
    %v175 = vrot.slane %v174, 1
    %v176 = vadd.f32 %v174, %v175
    %v177 = vlog2.pop %v176
    %v178 = vmul.f32 %v177, 0.6931472
    %v179 = vadd.f32 %v139, %v178
    %v180 = vsub.f32 %v121, %v179
    %v181 = vsub.f32 %v126, %v179
    %182 = vst.msk [vmem:[%s3] sm:$0xff] %vm129, %v180
    %183 = vst.msk [vmem:[%s3 + $0x8] sm:$0x3] %vm131, %v181
    // Predicated region
    $region18: #{tpu_custom_call.1} parent=1 // pred_check
      _
    $region19: #{tpu_custom_call.1} parent=1 // pred_check_branch
      %185 = sbr.rel (0) target = $region21
    $region20: #{tpu_custom_call.1} parent=1 // pred_region
      _
    $region21: #{tpu_custom_call.1} parent=1 // pred_fallthru
      _
    // Predicated region
    $region22: #{tpu_custom_call.1} parent=1 // pred_check
      _
    $region23: #{tpu_custom_call.1} parent=1 // pred_check_branch
      %187 = sbr.rel (0) target = $region25
    $region24: #{tpu_custom_call.1} parent=1 // pred_region
      %s189 = ssub.s32 16, 16
      %190 = vsyncadd [#allocation4], %s189
      %s192 = sshll.u32 [#allocation5], 4
      %s193 = int_to_ptr.vmem [resolvable:$true] %s192
      %195 = dma.vmem_to_hbm [thread:$0]  %s193, 16, %s4, [#allocation4]
    $region25: #{tpu_custom_call.1} parent=1 // pred_fallthru
      _
    // Predicated region
    $region26: #{tpu_custom_call.1} parent=1 // pred_check
      _
    $region27: #{tpu_custom_call.1} parent=1 // pred_check_branch
      %197 = sbr.rel (0) target = $region29
    $region28: #{tpu_custom_call.1} parent=1 // pred_region
      _
    $region29: #{tpu_custom_call.1} parent=1 // pred_fallthru
      _
    // Predicated region
    $region30: #{tpu_custom_call.1} parent=1 // pred_check
      _
    $region31: #{tpu_custom_call.1} parent=1 // pred_check_branch
      %199 = sbr.rel (0) target = $region33
    $region32: #{tpu_custom_call.1} parent=1 // pred_region
      %200 = dma.done [#allocation4], 16
    $region33: #{tpu_custom_call.1} parent=1 // pred_fallthru
      _
    %201 = vsyncpa [#allocation3], 1
    %202 = vsyncpa [#allocation4], 1

</llo_original>
